<compile_context>
chip_gen: v5e
topology: v5e:2x2
jax: 0.10.0
libtpu: 0.0.40
codegen_flags: <defaults>
</compile_context>

<pallas_src>
import functools

import jax
import jax.numpy as jnp
from jax.experimental import pallas as pl
from jax.experimental.pallas import tpu as pltpu

LANE = 128
SUBLANE = 16          # bf16 sublane packing -> batch-tile granularity
H1_CHUNK = 256        # chunk of the 1024-wide hidden layer per MXU pass


def _round_up(n, m):
    return ((n + m - 1) // m) * m


# ----------------------------------------------------------------------------
# Kernel
# ----------------------------------------------------------------------------
def _mlp_kernel(x_ref, w1_ref, b1_ref, w2_ref, b2_ref, w3_ref, b3_ref, o_ref):
    # x tile arrives in f32 straight from HBM (no wrapper pad/cast pass); cast
    # to bf16 on the VPU right before feeding the MXU.
    x = x_ref[...].astype(w1_ref.dtype)                              # (tb, 80)

    h1_dim = w1_ref.shape[1]                                         # 1024
    h2 = jnp.zeros((x_ref.shape[0], w2_ref.shape[1]), jnp.float32)   # (tb, 128)

    # Chunk H1 so the (tile_b, 1024) f32 hidden never materialises in VMEM:
    # matmul1 chunk -> bias + ReLU + bf16 cast -> partial matmul2 accumulate.
    # Static Python loop (4 iterations, static ref slices -> zero runtime cost).
    for c in range(0, h1_dim, H1_CHUNK):
        h1c = jnp.dot(x, w1_ref[:, c:c + H1_CHUNK],
                      preferred_element_type=jnp.float32)            # (tb, 256)
        h1c = jnp.maximum(h1c + b1_ref[:, c:c + H1_CHUNK], 0.0)
        h2 = h2 + jnp.dot(h1c.astype(w2_ref.dtype), w2_ref[c:c + H1_CHUNK, :],
                          preferred_element_type=jnp.float32)        # (tb, 128)

    h2 = jnp.maximum(h2 + b2_ref[...], 0.0)
    h3 = jnp.dot(h2.astype(w3_ref.dtype), w3_ref[...],
                 preferred_element_type=jnp.float32)                 # (tb, 8)
    o_ref[...] = (h3 + b3_ref[...]).astype(o_ref.dtype)


# ----------------------------------------------------------------------------
# One-time parameter preparation (hoisted out of the per-call path)
# ----------------------------------------------------------------------------
def prepare_params(params, *, compute_dtype=jnp.bfloat16):
    """Pad / cast the weights once.  Returns (prepared_tuple, out_features)."""
    w1, b1, w2, b2, w3, b3 = params
    h2_pad = _round_up(w2.shape[1], LANE)        # 64 -> 128 (lane-dense h2)
    out_pad = _round_up(w3.shape[1], 8)          # 2  -> 8   (tiny writeback)

    w1_p = w1.astype(compute_dtype)                                       # (80,1024)
    b1_p = b1.reshape(1, -1).astype(jnp.float32)                          # (1,1024)
    w2_p = jnp.pad(w2, ((0, 0), (0, h2_pad - w2.shape[1]))).astype(compute_dtype)
    b2_p = jnp.pad(b2.reshape(1, -1),
                   ((0, 0), (0, h2_pad - b2.shape[-1]))).astype(jnp.float32)
    w3_p = jnp.pad(w3, ((0, h2_pad - w3.shape[0]),
                        (0, out_pad - w3.shape[1]))).astype(compute_dtype)
    b3_p = jnp.pad(b3.reshape(1, -1),
                   ((0, 0), (0, out_pad - b3.shape[-1]))).astype(jnp.float32)
    return (w1_p, b1_p, w2_p, b2_p, w3_p, b3_p), w3.shape[1]


# ----------------------------------------------------------------------------
# Batch-tile heuristic
# ----------------------------------------------------------------------------
def _default_tile_b(batch):
    batch = max(batch, 1)
    if batch <= 256:
        # Tiny batch: weight-DMA / launch bound; one sublane-rounded tile.
        return _round_up(batch, SUBLANE)
    # Larger batch: even number of tiles (2-TC megacore on v7x), <= 2048 rows
    # per tile (amortises the ~0.35 us per-step pipeline overhead while keeping
    # the chunked-H1 scratch comfortably inside v7x's 64 MiB VMEM).
    n_tiles = 2 * pl.cdiv(batch, 2 * 2048)
    return min(2048, _round_up(pl.cdiv(batch, n_tiles), SUBLANE))


# ----------------------------------------------------------------------------
# Forward
# ----------------------------------------------------------------------------
@functools.partial(jax.jit, static_argnames=("out_features", "tile_b"))
def sr_model_forward(x, prepared, *, out_features=2, tile_b=None):
    """x: (B, T, D) float32.  prepared: output of prepare_params.
    Returns (B, out_features) float32."""
    w1_p, b1_p, w2_p, b2_p, w3_p, b3_p = prepared
    batch = x.shape[0]
    x2d = x.reshape(batch, -1)                   # (B, 80), free reshape
    k_in = x2d.shape[1]
    assert k_in == w1_p.shape[0]

    if tile_b is None:
        tile_b = _default_tile_b(batch)
    b_pad = _round_up(max(batch, 1), tile_b)
    if b_pad != batch:
        x2d = jnp.pad(x2d, ((0, b_pad - batch), (0, 0)))

    h1 = w1_p.shape[1]                           # 1024
    h2 = w2_p.shape[1]                           # 128
    n_out = w3_p.shape[1]                        # 8
    grid = (b_pad // tile_b,)

    flops = 2 * b_pad * (k_in * h1 + h1 * h2 + h2 * n_out)
    bytes_accessed = (
        b_pad * k_in * 4                         # x (f32, un-padded)
        + (k_in * h1 + h1 * h2 + h2 * n_out) * 2 # weights (bf16)
        + (h1 + h2 + n_out) * 4                  # biases (f32)
        + b_pad * n_out * 4                      # output (f32, 8 lanes)
    )

    out = pl.pallas_call(
        _mlp_kernel,
        out_shape=jax.ShapeDtypeStruct((b_pad, n_out), jnp.float32),
        grid_spec=pltpu.PrefetchScalarGridSpec(
            num_scalar_prefetch=0,
            grid=grid,
            in_specs=[
                # x tile: pipelined over the batch grid, f32, 80 lanes (= full
                # last dim, so the (8,128) rule is satisfied without padding).
                pl.BlockSpec((tile_b, k_in), lambda i: (i, 0)),
                # Weights / biases: constant index_map -> DMA'd once, stay
                # VMEM-resident across grid steps.
                pl.BlockSpec((k_in, h1), lambda i: (0, 0)),   # w1 (80, 1024)
                pl.BlockSpec((1, h1), lambda i: (0, 0)),      # b1 (1, 1024)
                pl.BlockSpec((h1, h2), lambda i: (0, 0)),     # w2 (1024, 128)
                pl.BlockSpec((1, h2), lambda i: (0, 0)),      # b2 (1, 128)
                pl.BlockSpec((h2, n_out), lambda i: (0, 0)),  # w3 (128, 8)
                pl.BlockSpec((1, n_out), lambda i: (0, 0)),   # b3 (1, 8)
            ],
            out_specs=pl.BlockSpec((tile_b, n_out), lambda i: (i, 0)),
        ),
        compiler_params=pltpu.CompilerParams(
            dimension_semantics=("parallel",),   # megacore-sharded batch on v7x
            vmem_limit_bytes=48 * 1024 * 1024,   # < v7x 64 MiB/TC, ample elsewhere
        ),
        cost_estimate=pl.CostEstimate(
            flops=flops, transcendentals=0, bytes_accessed=bytes_accessed),
    )(x2d, w1_p, b1_p, w2_p, b2_p, w3_p, b3_p)

    return out[:batch, :out_features]


# ----------------------------------------------------------------------------
# Params / references / self-test
# ----------------------------------------------------------------------------
def init_params(key, input_size=8, time_steps=10, output_size=2):
    """Deterministic init mimicking nn.Linear's U(-1/sqrt(fan_in), 1/sqrt(fan_in))."""
    flat = input_size * time_steps
    dims = [(flat, 1024), (1024, 64), (64, output_size)]
    params = []
    for (fan_in, fan_out) in dims:
        key, kw, kb = jax.random.split(key, 3)
        bound = 1.0 / jnp.sqrt(fan_in)
        w = jax.random.uniform(kw, (fan_in, fan_out), jnp.float32, -bound, bound)
        b = jax.random.uniform(kb, (1, fan_out), jnp.float32, -bound, bound)
        params += [w, b]
    return tuple(params)


def reference_forward_f32(x, params):
    """Pure f32 reference matching the PyTorch module exactly."""
    w1, b1, w2, b2, w3, b3 = params
    x2d = x.reshape(x.shape[0], -1)
    h1 = jnp.maximum(x2d @ w1 + b1, 0.0)
    h2 = jnp.maximum(h1 @ w2 + b2, 0.0)
    return h2 @ w3 + b3


def reference_forward_bf16(x, params):
    """Reference mirroring the kernel's bf16 MXU inputs / f32 accumulation."""
    w1, b1, w2, b2, w3, b3 = params
    f32, bf16 = jnp.float32, jnp.bfloat16
    q = lambda a: a.astype(bf16).astype(f32)
    x2d = x.reshape(x.shape[0], -1)
    h1 = jnp.maximum(q(x2d) @ q(w1) + b1, 0.0)
    h2 = jnp.maximum(q(h1) @ q(w2) + b2, 0.0)
    return q(h2) @ q(w3) + b3


if __name__ == "__main__":
    key = jax.random.PRNGKey(0)
    key, kx = jax.random.split(key)

    B, T, D = 2, 10, 8          # batch=2, time_steps=10, input_size=8
    x = jax.random.normal(kx, (B, T, D), dtype=jnp.float32)
    params = init_params(jax.random.PRNGKey(0), input_size=D, time_steps=T,
                         output_size=2)

    # One-time weight prep (hoisted out of the per-call path).
    prepared, out_features = prepare_params(params)
    prepared = jax.block_until_ready(prepared)

    out = jax.block_until_ready(
        sr_model_forward(x, prepared, out_features=out_features))
    assert out.shape == (B, 2)
    ref_q = reference_forward_bf16(x, params)
    ref_f = reference_forward_f32(x, params)
    assert jnp.allclose(out, ref_q, atol=1e-3, rtol=1e-3), "mismatch vs bf16 reference"
    assert jnp.allclose(out, ref_f, atol=5e-2, rtol=5e-2), "mismatch vs f32 reference"

    # Larger batch: exercises batch padding + even multi-tile grid (megacore).
    key, kx2 = jax.random.split(key)
    B2 = 300
    x2 = jax.random.normal(kx2, (B2, T, D), dtype=jnp.float32)
    out2 = jax.block_until_ready(
        sr_model_forward(x2, prepared, out_features=out_features))
    assert out2.shape == (B2, 2)
    ref2 = reference_forward_bf16(x2, params)
    assert jnp.allclose(out2, ref2, atol=1e-3, rtol=1e-3), "mismatch on multi-tile batch"

    print("KERNEL_OK")
</pallas_src>

<mosaic_0001>
module attributes {stable_mosaic.version = 11 : i64} {
  func.func @_mlp_kernel(%arg0: i32, %arg1: memref<16x80xf32, #tpu.memory_space<vmem>>, %arg2: memref<80x1024xbf16, #tpu.memory_space<vmem>>, %arg3: memref<1x1024xf32, #tpu.memory_space<vmem>>, %arg4: memref<1024x128xbf16, #tpu.memory_space<vmem>>, %arg5: memref<1x128xf32, #tpu.memory_space<vmem>>, %arg6: memref<128x8xbf16, #tpu.memory_space<vmem>>, %arg7: memref<1x8xf32, #tpu.memory_space<vmem>>, %arg8: memref<16x8xf32, #tpu.memory_space<vmem>>) attributes {dimension_semantics = [#tpu.dimension_semantics<parallel>], iteration_bounds = array<i64: 1>, scalar_prefetch = 0 : i64, scratch_operands = 0 : i64, tpu.core_type = #tpu.core_type<tc>, window_params = [{transform_indices = @transform_0, window_bounds = array<i64: 16, 80>}, {pipeline_mode = #tpu.pipeline_mode<synchronous>, transform_indices = @transform_1, window_bounds = array<i64: 80, 1024>}, {pipeline_mode = #tpu.pipeline_mode<synchronous>, transform_indices = @transform_2, window_bounds = array<i64: 1, 1024>}, {pipeline_mode = #tpu.pipeline_mode<synchronous>, transform_indices = @transform_3, window_bounds = array<i64: 1024, 128>}, {pipeline_mode = #tpu.pipeline_mode<synchronous>, transform_indices = @transform_4, window_bounds = array<i64: 1, 128>}, {pipeline_mode = #tpu.pipeline_mode<synchronous>, transform_indices = @transform_5, window_bounds = array<i64: 128, 8>}, {pipeline_mode = #tpu.pipeline_mode<synchronous>, transform_indices = @transform_6, window_bounds = array<i64: 1, 8>}, {transform_indices = @transform_7, window_bounds = array<i64: 16, 8>}]} {
    %c0 = arith.constant 0 : index
    %c0_0 = arith.constant 0 : index
    %0 = vector.load %arg1[%c0, %c0_0] : memref<16x80xf32, #tpu.memory_space<vmem>>, vector<16x80xf32>
    %1 = arith.truncf %0 : vector<16x80xf32> to vector<16x80xbf16>
    %cst = arith.constant 0.000000e+00 : f32
    %2 = vector.broadcast %cst : f32 to vector<16x128xf32>
    %c0_1 = arith.constant 0 : index
    %c0_2 = arith.constant 0 : index
    %3 = vector.load %arg2[%c0_1, %c0_2] : memref<80x1024xbf16, #tpu.memory_space<vmem>>, vector<80x256xbf16>
    %cst_3 = arith.constant dense<0.000000e+00> : vector<16x256xf32>
    %4 = tpu.matmul %1, %3, %cst_3 {dimension_numbers = #tpu.dot_dimension_numbers<[1], [0], [0], [1], [0, 0, 1, 1], [], []>} : vector<16x80xbf16>, vector<80x256xbf16>, vector<16x256xf32> -> vector<16x256xf32>
    %c0_4 = arith.constant 0 : index
    %c0_5 = arith.constant 0 : index
    %5 = vector.load %arg3[%c0_4, %c0_5] : memref<1x1024xf32, #tpu.memory_space<vmem>>, vector<1x256xf32>
    %6 = vector.broadcast %5 : vector<1x256xf32> to vector<16x256xf32>
    %7 = arith.addf %4, %6 : vector<16x256xf32>
    %cst_6 = arith.constant 0.000000e+00 : f32
    %8 = vector.broadcast %cst_6 : f32 to vector<16x256xf32>
    %9 = arith.maximumf %7, %8 : vector<16x256xf32>
    %10 = arith.truncf %9 : vector<16x256xf32> to vector<16x256xbf16>
    %c0_7 = arith.constant 0 : index
    %c0_8 = arith.constant 0 : index
    %11 = vector.load %arg4[%c0_7, %c0_8] : memref<1024x128xbf16, #tpu.memory_space<vmem>>, vector<256x128xbf16>
    %cst_9 = arith.constant dense<0.000000e+00> : vector<16x128xf32>
    %12 = tpu.matmul %10, %11, %cst_9 {dimension_numbers = #tpu.dot_dimension_numbers<[1], [0], [0], [1], [0, 0, 1, 1], [], []>} : vector<16x256xbf16>, vector<256x128xbf16>, vector<16x128xf32> -> vector<16x128xf32>
    %13 = arith.addf %2, %12 : vector<16x128xf32>
    %c0_10 = arith.constant 0 : index
    %c256 = arith.constant 256 : index
    %14 = vector.load %arg2[%c0_10, %c256] : memref<80x1024xbf16, #tpu.memory_space<vmem>>, vector<80x256xbf16>
    %cst_11 = arith.constant dense<0.000000e+00> : vector<16x256xf32>
    %15 = tpu.matmul %1, %14, %cst_11 {dimension_numbers = #tpu.dot_dimension_numbers<[1], [0], [0], [1], [0, 0, 1, 1], [], []>} : vector<16x80xbf16>, vector<80x256xbf16>, vector<16x256xf32> -> vector<16x256xf32>
    %c0_12 = arith.constant 0 : index
    %c256_13 = arith.constant 256 : index
    %16 = vector.load %arg3[%c0_12, %c256_13] : memref<1x1024xf32, #tpu.memory_space<vmem>>, vector<1x256xf32>
    %17 = vector.broadcast %16 : vector<1x256xf32> to vector<16x256xf32>
    %18 = arith.addf %15, %17 : vector<16x256xf32>
    %cst_14 = arith.constant 0.000000e+00 : f32
    %19 = vector.broadcast %cst_14 : f32 to vector<16x256xf32>
    %20 = arith.maximumf %18, %19 : vector<16x256xf32>
    %21 = arith.truncf %20 : vector<16x256xf32> to vector<16x256xbf16>
    %c256_15 = arith.constant 256 : index
    %c0_16 = arith.constant 0 : index
    %22 = vector.load %arg4[%c256_15, %c0_16] : memref<1024x128xbf16, #tpu.memory_space<vmem>>, vector<256x128xbf16>
    %cst_17 = arith.constant dense<0.000000e+00> : vector<16x128xf32>
    %23 = tpu.matmul %21, %22, %cst_17 {dimension_numbers = #tpu.dot_dimension_numbers<[1], [0], [0], [1], [0, 0, 1, 1], [], []>} : vector<16x256xbf16>, vector<256x128xbf16>, vector<16x128xf32> -> vector<16x128xf32>
    %24 = arith.addf %13, %23 : vector<16x128xf32>
    %c0_18 = arith.constant 0 : index
    %c512 = arith.constant 512 : index
    %25 = vector.load %arg2[%c0_18, %c512] : memref<80x1024xbf16, #tpu.memory_space<vmem>>, vector<80x256xbf16>
    %cst_19 = arith.constant dense<0.000000e+00> : vector<16x256xf32>
    %26 = tpu.matmul %1, %25, %cst_19 {dimension_numbers = #tpu.dot_dimension_numbers<[1], [0], [0], [1], [0, 0, 1, 1], [], []>} : vector<16x80xbf16>, vector<80x256xbf16>, vector<16x256xf32> -> vector<16x256xf32>
    %c0_20 = arith.constant 0 : index
    %c512_21 = arith.constant 512 : index
    %27 = vector.load %arg3[%c0_20, %c512_21] : memref<1x1024xf32, #tpu.memory_space<vmem>>, vector<1x256xf32>
    %28 = vector.broadcast %27 : vector<1x256xf32> to vector<16x256xf32>
    %29 = arith.addf %26, %28 : vector<16x256xf32>
    %cst_22 = arith.constant 0.000000e+00 : f32
    %30 = vector.broadcast %cst_22 : f32 to vector<16x256xf32>
    %31 = arith.maximumf %29, %30 : vector<16x256xf32>
    %32 = arith.truncf %31 : vector<16x256xf32> to vector<16x256xbf16>
    %c512_23 = arith.constant 512 : index
    %c0_24 = arith.constant 0 : index
    %33 = vector.load %arg4[%c512_23, %c0_24] : memref<1024x128xbf16, #tpu.memory_space<vmem>>, vector<256x128xbf16>
    %cst_25 = arith.constant dense<0.000000e+00> : vector<16x128xf32>
    %34 = tpu.matmul %32, %33, %cst_25 {dimension_numbers = #tpu.dot_dimension_numbers<[1], [0], [0], [1], [0, 0, 1, 1], [], []>} : vector<16x256xbf16>, vector<256x128xbf16>, vector<16x128xf32> -> vector<16x128xf32>
    %35 = arith.addf %24, %34 : vector<16x128xf32>
    %c0_26 = arith.constant 0 : index
    %c768 = arith.constant 768 : index
    %36 = vector.load %arg2[%c0_26, %c768] : memref<80x1024xbf16, #tpu.memory_space<vmem>>, vector<80x256xbf16>
    %cst_27 = arith.constant dense<0.000000e+00> : vector<16x256xf32>
    %37 = tpu.matmul %1, %36, %cst_27 {dimension_numbers = #tpu.dot_dimension_numbers<[1], [0], [0], [1], [0, 0, 1, 1], [], []>} : vector<16x80xbf16>, vector<80x256xbf16>, vector<16x256xf32> -> vector<16x256xf32>
    %c0_28 = arith.constant 0 : index
    %c768_29 = arith.constant 768 : index
    %38 = vector.load %arg3[%c0_28, %c768_29] : memref<1x1024xf32, #tpu.memory_space<vmem>>, vector<1x256xf32>
    %39 = vector.broadcast %38 : vector<1x256xf32> to vector<16x256xf32>
    %40 = arith.addf %37, %39 : vector<16x256xf32>
    %cst_30 = arith.constant 0.000000e+00 : f32
    %41 = vector.broadcast %cst_30 : f32 to vector<16x256xf32>
    %42 = arith.maximumf %40, %41 : vector<16x256xf32>
    %43 = arith.truncf %42 : vector<16x256xf32> to vector<16x256xbf16>
    %c768_31 = arith.constant 768 : index
    %c0_32 = arith.constant 0 : index
    %44 = vector.load %arg4[%c768_31, %c0_32] : memref<1024x128xbf16, #tpu.memory_space<vmem>>, vector<256x128xbf16>
    %cst_33 = arith.constant dense<0.000000e+00> : vector<16x128xf32>
    %45 = tpu.matmul %43, %44, %cst_33 {dimension_numbers = #tpu.dot_dimension_numbers<[1], [0], [0], [1], [0, 0, 1, 1], [], []>} : vector<16x256xbf16>, vector<256x128xbf16>, vector<16x128xf32> -> vector<16x128xf32>
    %46 = arith.addf %35, %45 : vector<16x128xf32>
    %c0_34 = arith.constant 0 : index
    %c0_35 = arith.constant 0 : index
    %47 = vector.load %arg5[%c0_34, %c0_35] : memref<1x128xf32, #tpu.memory_space<vmem>>, vector<1x128xf32>
    %48 = vector.broadcast %47 : vector<1x128xf32> to vector<16x128xf32>
    %49 = arith.addf %46, %48 : vector<16x128xf32>
    %cst_36 = arith.constant 0.000000e+00 : f32
    %50 = vector.broadcast %cst_36 : f32 to vector<16x128xf32>
    %51 = arith.maximumf %49, %50 : vector<16x128xf32>
    %52 = arith.truncf %51 : vector<16x128xf32> to vector<16x128xbf16>
    %c0_37 = arith.constant 0 : index
    %c0_38 = arith.constant 0 : index
    %53 = vector.load %arg6[%c0_37, %c0_38] : memref<128x8xbf16, #tpu.memory_space<vmem>>, vector<128x8xbf16>
    %cst_39 = arith.constant dense<0.000000e+00> : vector<16x8xf32>
    %54 = tpu.matmul %52, %53, %cst_39 {dimension_numbers = #tpu.dot_dimension_numbers<[1], [0], [0], [1], [0, 0, 1, 1], [], []>} : vector<16x128xbf16>, vector<128x8xbf16>, vector<16x8xf32> -> vector<16x8xf32>
    %c0_40 = arith.constant 0 : index
    %c0_41 = arith.constant 0 : index
    %55 = vector.load %arg7[%c0_40, %c0_41] : memref<1x8xf32, #tpu.memory_space<vmem>>, vector<1x8xf32>
    %56 = vector.broadcast %55 : vector<1x8xf32> to vector<16x8xf32>
    %57 = arith.addf %54, %56 : vector<16x8xf32>
    %c0_42 = arith.constant 0 : index
    %c0_43 = arith.constant 0 : index
    %58 = vector.load %arg8[%c0_42, %c0_43] : memref<16x8xf32, #tpu.memory_space<vmem>>, vector<16x8xf32>
    tpu.vector_store %arg8[%c0_42, %c0_43], %57 {strides = array<i32>} : memref<16x8xf32, #tpu.memory_space<vmem>>, vector<16x8xf32>,
    return
  }
  func.func @transform_0(%arg0: i32) -> (i32, i32) {
    %c0_i32 = arith.constant 0 : i32
    %c0_i32_0 = arith.constant 0 : i32
    return %arg0, %c0_i32 : i32, i32
  }
  func.func @transform_1(%arg0: i32) -> (i32, i32) {
    %c0_i32 = arith.constant 0 : i32
    %c0_i32_0 = arith.constant 0 : i32
    %c0_i32_1 = arith.constant 0 : i32
    return %c0_i32, %c0_i32_0 : i32, i32
  }
  func.func @transform_2(%arg0: i32) -> (i32, i32) {
    %c0_i32 = arith.constant 0 : i32
    %c0_i32_0 = arith.constant 0 : i32
    %c0_i32_1 = arith.constant 0 : i32
    return %c0_i32, %c0_i32_0 : i32, i32
  }
  func.func @transform_3(%arg0: i32) -> (i32, i32) {
    %c0_i32 = arith.constant 0 : i32
    %c0_i32_0 = arith.constant 0 : i32
    %c0_i32_1 = arith.constant 0 : i32
    return %c0_i32, %c0_i32_0 : i32, i32
  }
  func.func @transform_4(%arg0: i32) -> (i32, i32) {
    %c0_i32 = arith.constant 0 : i32
    %c0_i32_0 = arith.constant 0 : i32
    %c0_i32_1 = arith.constant 0 : i32
    return %c0_i32, %c0_i32_0 : i32, i32
  }
  func.func @transform_5(%arg0: i32) -> (i32, i32) {
    %c0_i32 = arith.constant 0 : i32
    %c0_i32_0 = arith.constant 0 : i32
    %c0_i32_1 = arith.constant 0 : i32
    return %c0_i32, %c0_i32_0 : i32, i32
  }
  func.func @transform_6(%arg0: i32) -> (i32, i32) {
    %c0_i32 = arith.constant 0 : i32
    %c0_i32_0 = arith.constant 0 : i32
    %c0_i32_1 = arith.constant 0 : i32
    return %c0_i32, %c0_i32_0 : i32, i32
  }
  func.func @transform_7(%arg0: i32) -> (i32, i32) {
    %c0_i32 = arith.constant 0 : i32
    %c0_i32_0 = arith.constant 0 : i32
    return %arg0, %c0_i32 : i32, i32
  }
}

</mosaic_0001>

<llo_original>
// kernel: sr_model_forward.1
$region0: #{sr_model_forward.1}
  #allocation0 [shape = 'u32[]', space=smem, size = 0x4, offset = 0x4, fixed_abs, tag = 'smem constant byte address 0x4 - core index']
  #allocation1 [shape = 'u32[72,128]{1,0:T(1,128)}', space=vmem, size = 0x9000, scoped, tag = 'internal scratch']
  %s0 = inlined_call_operand.vmem [shape: f32[16,80], index: 0, kind: input, shape index: {}]
  %s1 = inlined_call_operand.hbm [shape: bf16[80,1024], index: 1, kind: input, shape index: {}]
  %s2 = inlined_call_operand.vmem [shape: f32[1,1024], index: 2, kind: input, shape index: {}]
  %s3 = inlined_call_operand.hbm [shape: bf16[1024,128], index: 3, kind: input, shape index: {}]
  %s4 = inlined_call_operand.vmem [shape: f32[1,128], index: 4, kind: input, shape index: {}]
  %s5 = inlined_call_operand.vmem [shape: bf16[128,8], index: 5, kind: input, shape index: {}]
  %s6 = inlined_call_operand.vmem [shape: f32[1,8], index: 6, kind: input, shape index: {}]
  %s7 = inlined_call_operand.vmem [shape: f32[16,8], index: 7, kind: output, shape index: {}]
  %s8 = sld [smem:[#allocation0]]
  $region46: #{sr_model_forward.1} parent=0
    _
  %s10 = ssub.s32 1, %s8
  %s11 = scalar_select 0, %s10, %s8
  $region1: #{sr_model_forward.1} parent=0
    #allocation2 [shape = 'u8[163840]{0}', space=vmem, size = 0x28000, scoped, tag = 'input window, operand 1, single buffered']
    #allocation3 [shape = 's32[1]{0}', space=sflag, size = 0x4, scoped, tag = 'scoped memory for sr_model_forward.1']
    #allocation4 [shape = 'u8[262144]{0}', space=vmem, size = 0x40000, scoped, tag = 'input window, operand 3, single buffered']
    #allocation5 [shape = 's32[1]{0}', space=sflag, size = 0x4, scoped, tag = 'scoped memory for sr_model_forward.1']
    %12 = vsyncpa [#allocation3], 0
    %13 = vsyncpa [#allocation5], 0
    // Predicated region
    $region2: #{sr_model_forward.1} parent=1 // pred_check
      _
    $region3: #{sr_model_forward.1} parent=1 // pred_check_branch
      %15 = sbr.rel (0) target = $region5
    $region4: #{sr_model_forward.1} parent=1 // pred_region
      _
    $region5: #{sr_model_forward.1} parent=1 // pred_fallthru
      _
    // Predicated region
    $region6: #{sr_model_forward.1} parent=1 // pred_check
      _
    $region7: #{sr_model_forward.1} parent=1 // pred_check_branch
      %17 = sbr.rel (0) target = $region9
    $region8: #{sr_model_forward.1} parent=1 // pred_region
      %19 = vsyncadd [#allocation3], 0
      %s20 = sshll.u32 %s1, 4
      %s21 = int_to_ptr.hbm [resolvable:$true] %s20
      %s22 = sshll.u32 [#allocation2], 4
      %s23 = int_to_ptr.vmem [resolvable:$true] %s22
      %28 = dma.hbm_to_vmem [thread:$0]  %s21, 5120, %s23, [#allocation3], 512, 512, 32
    $region9: #{sr_model_forward.1} parent=1 // pred_fallthru
      _
    // Predicated region
    $region10: #{sr_model_forward.1} parent=1 // pred_check
      _
    $region11: #{sr_model_forward.1} parent=1 // pred_check_branch
      %30 = sbr.rel (0) target = $region13
    $region12: #{sr_model_forward.1} parent=1 // pred_region
      _
    $region13: #{sr_model_forward.1} parent=1 // pred_fallthru
      _
    // Predicated region
    $region14: #{sr_model_forward.1} parent=1 // pred_check
      _
    $region15: #{sr_model_forward.1} parent=1 // pred_check_branch
      %32 = sbr.rel (0) target = $region17
    $region16: #{sr_model_forward.1} parent=1 // pred_region
      %34 = vsyncadd [#allocation5], 0
      %s35 = sshll.u32 %s3, 4
      %s36 = int_to_ptr.hbm [resolvable:$true] %s35
      %s37 = sshll.u32 [#allocation4], 4
      %s38 = int_to_ptr.vmem [resolvable:$true] %s37
      %43 = dma.hbm_to_vmem [thread:$0]  %s36, 8192, %s38, [#allocation5], 64, 64, 4
    $region17: #{sr_model_forward.1} parent=1 // pred_fallthru
      _
    // Predicated region
    $region18: #{sr_model_forward.1} parent=1 // pred_check
      _
    $region19: #{sr_model_forward.1} parent=1 // pred_check_branch
      %45 = sbr.rel (0) target = $region21
    $region20: #{sr_model_forward.1} parent=1 // pred_region
      _
    $region21: #{sr_model_forward.1} parent=1 // pred_fallthru
      _
    // Predicated region
    $region22: #{sr_model_forward.1} parent=1 // pred_check
      _
    $region23: #{sr_model_forward.1} parent=1 // pred_check_branch
      %47 = sbr.rel (0) target = $region25
    $region24: #{sr_model_forward.1} parent=1 // pred_region
      _
    $region25: #{sr_model_forward.1} parent=1 // pred_fallthru
      _
    // Predicated region
    $region26: #{sr_model_forward.1} parent=1 // pred_check
      _
    $region27: #{sr_model_forward.1} parent=1 // pred_check_branch
      %49 = sbr.rel (0) target = $region29
    $region28: #{sr_model_forward.1} parent=1 // pred_region
      _
    $region29: #{sr_model_forward.1} parent=1 // pred_fallthru
      _
    // Predicated region
    $region30: #{sr_model_forward.1} parent=1 // pred_check
      _
    $region31: #{sr_model_forward.1} parent=1 // pred_check_branch
      %51 = sbr.rel (0) target = $region33
    $region32: #{sr_model_forward.1} parent=1 // pred_region
      %53 = dma.done [#allocation3], 5120
    $region33: #{sr_model_forward.1} parent=1 // pred_fallthru
      _
    // Predicated region
    $region34: #{sr_model_forward.1} parent=1 // pred_check
      _
    $region35: #{sr_model_forward.1} parent=1 // pred_check_branch
      %55 = sbr.rel (0) target = $region37
    $region36: #{sr_model_forward.1} parent=1 // pred_region
      %57 = dma.done [#allocation5], 8192
    $region37: #{sr_model_forward.1} parent=1 // pred_fallthru
      _
    %v59 = vld [vmem:[%s0] sm:$0xff]
    %v60 = vld [vmem:[%s0 + $0x8] sm:$0xff]
    %v61 = vpack.c.bf16 %v60, %v59
    %v62 = vld [vmem:[#allocation2] sm:$0xff]
    %v63 = vld [vmem:[#allocation2 + $0x20] sm:$0xff]
    %v64 = vld [vmem:[#allocation2 + $0x40] sm:$0xff]
    %v65 = vld [vmem:[#allocation2 + $0x60] sm:$0xff]
    %v66 = vld [vmem:[#allocation2 + $0x80] sm:$0xff]
    %v67 = vld [vmem:[#allocation2 + $0xa0] sm:$0xff]
    %v68 = vld [vmem:[#allocation2 + $0xc0] sm:$0xff]
    %v69 = vld [vmem:[#allocation2 + $0xe0] sm:$0xff]
    %v70 = vld [vmem:[#allocation2 + $0x100] sm:$0xff]
    %v71 = vld [vmem:[#allocation2 + $0x120] sm:$0xff]
    %v72 = vld [vmem:[%s2] sm:$0x3]
    %v74 = vperm.slane %v72, 0
    %v75 = vperm.slane %v72, 1
    %v88 = vunpack.c.l.b16 %v62
    %v89 = vunpack.c.h.b16 %v62
    %v90 = vunpack.c.l.b16 %v63
    %v91 = vunpack.c.h.b16 %v63
    %v92 = vunpack.c.l.b16 %v64
    %v93 = vunpack.c.h.b16 %v64
    %v94 = vunpack.c.l.b16 %v65
    %v95 = vunpack.c.h.b16 %v65
    %v96 = vunpack.c.l.b16 %v66
    %v97 = vunpack.c.h.b16 %v66
    %v98 = vunpack.c.l.b16 %v67
    %v99 = vunpack.c.h.b16 %v67
    %v100 = vunpack.c.l.b16 %v68
    %v101 = vunpack.c.h.b16 %v68
    %v102 = vunpack.c.l.b16 %v69
    %v103 = vunpack.c.h.b16 %v69
    %v104 = vunpack.c.l.b16 %v70
    %v105 = vunpack.c.h.b16 %v70
    %v106 = vunpack.c.l.b16 %v71
    %v107 = vunpack.c.h.b16 %v71
    %v108 = vpack.c.b16 %v90, %v88
    %v109 = vpack.c.b16 %v91, %v89
    %v110 = vpack.c.b16 %v94, %v92
    %v111 = vpack.c.b16 %v95, %v93
    %v112 = vpack.c.b16 %v98, %v96
    %v113 = vpack.c.b16 %v99, %v97
    %v114 = vpack.c.b16 %v102, %v100
    %v115 = vpack.c.b16 %v103, %v101
    %v116 = vpack.c.b16 %v106, %v104
    %v117 = vpack.c.b16 %v107, %v105
    %vm128 = vcmask 654336
    %v130 = vsel %vm128, %v61, 0
    %132 = vmatpush.bf16.msra.mxu0 0
    %133 = vmatpush.bf16.msra.mxu0 0
    %134 = vmatpush.bf16.msra.mxu0 0
    %135 = vmatpush.bf16.msra.mxu0 %v116
    %136 = vmatpush.bf16.msra.mxu0 %v114
    %137 = vmatpush.bf16.msra.mxu0 %v112
    %138 = vmatpush.bf16.msra.mxu0 %v110
    %139 = vmatpush.bf16.msra.mxu0 %v108
    %140 = vmatmul.bf16.gmra.mxu0 %v130
    %v141 = vpop.f32.mrf.mxu0
    %v142 = vadd.f32 %v74, %v141
    %v143 = vpop.f32.mrf.mxu0
    %v144 = vadd.f32 %v74, %v143
    %145 = vdwg.mxu0
    %146 = vmatpush.bf16.msra.mxu0 0
    %147 = vmatpush.bf16.msra.mxu0 0
    %148 = vmatpush.bf16.msra.mxu0 0
    %149 = vmatpush.bf16.msra.mxu0 %v117
    %150 = vmatpush.bf16.msra.mxu0 %v115
    %151 = vmatpush.bf16.msra.mxu0 %v113
    %152 = vmatpush.bf16.msra.mxu0 %v111
    %153 = vmatpush.bf16.msra.mxu0 %v109
    %154 = vmatmul.bf16.gmra.mxu0 %v130
    %v155 = vpop.f32.mrf.mxu0
    %v156 = vadd.f32 %v75, %v155
    %v157 = vpop.f32.mrf.mxu0
    %v158 = vadd.f32 %v75, %v157
    %159 = vdwg.mxu0
    %v160 = vmax.f32 %v142, 0.0
    %v161 = vmax.f32 %v156, 0.0
    %v162 = vmax.f32 %v144, 0.0
    %v163 = vmax.f32 %v158, 0.0
    %v164 = vpack.c.bf16 %v162, %v160
    %v165 = vpack.c.bf16 %v163, %v161
    %v166 = vld [vmem:[#allocation4] sm:$0xf]
    %v167 = vld [vmem:[#allocation4 + $0x4] sm:$0xf]
    %v168 = vld [vmem:[#allocation4 + $0x8] sm:$0xf]
    %v169 = vld [vmem:[#allocation4 + $0xc] sm:$0xf]
    %v170 = vld [vmem:[#allocation4 + $0x10] sm:$0xf]
    %v171 = vld [vmem:[#allocation4 + $0x14] sm:$0xf]
    %v172 = vld [vmem:[#allocation4 + $0x18] sm:$0xf]
    %v173 = vld [vmem:[#allocation4 + $0x1c] sm:$0xf]
    %v174 = vld [vmem:[#allocation4 + $0x20] sm:$0xf]
    %v175 = vld [vmem:[#allocation4 + $0x24] sm:$0xf]
    %v176 = vld [vmem:[#allocation4 + $0x28] sm:$0xf]
    %v177 = vld [vmem:[#allocation4 + $0x2c] sm:$0xf]
    %v178 = vld [vmem:[#allocation4 + $0x30] sm:$0xf]
    %v179 = vld [vmem:[#allocation4 + $0x34] sm:$0xf]
    %v180 = vld [vmem:[#allocation4 + $0x38] sm:$0xf]
    %v181 = vld [vmem:[#allocation4 + $0x3c] sm:$0xf]
    %v182 = vld [vmem:[#allocation4 + $0x40] sm:$0xf]
    %v183 = vld [vmem:[#allocation4 + $0x44] sm:$0xf]
    %v184 = vld [vmem:[#allocation4 + $0x48] sm:$0xf]
    %v185 = vld [vmem:[#allocation4 + $0x4c] sm:$0xf]
    %v186 = vld [vmem:[#allocation4 + $0x50] sm:$0xf]
    %v187 = vld [vmem:[#allocation4 + $0x54] sm:$0xf]
    %v188 = vld [vmem:[#allocation4 + $0x58] sm:$0xf]
    %v189 = vld [vmem:[#allocation4 + $0x5c] sm:$0xf]
    %v190 = vld [vmem:[#allocation4 + $0x60] sm:$0xf]
    %v191 = vld [vmem:[#allocation4 + $0x64] sm:$0xf]
    %v192 = vld [vmem:[#allocation4 + $0x68] sm:$0xf]
    %v193 = vld [vmem:[#allocation4 + $0x6c] sm:$0xf]
    %v194 = vld [vmem:[#allocation4 + $0x70] sm:$0xf]
    %v195 = vld [vmem:[#allocation4 + $0x74] sm:$0xf]
    %v196 = vld [vmem:[#allocation4 + $0x78] sm:$0xf]
    %v197 = vld [vmem:[#allocation4 + $0x7c] sm:$0xf]
    %v198 = vld [vmem:[#allocation2 + $0x8] sm:$0xff]
    %v199 = vld [vmem:[#allocation2 + $0x28] sm:$0xff]
    %v200 = vld [vmem:[#allocation2 + $0x48] sm:$0xff]
    %v201 = vld [vmem:[#allocation2 + $0x68] sm:$0xff]
    %v202 = vld [vmem:[#allocation2 + $0x88] sm:$0xff]
    %v203 = vld [vmem:[#allocation2 + $0xa8] sm:$0xff]
    %v204 = vld [vmem:[#allocation2 + $0xc8] sm:$0xff]
    %v205 = vld [vmem:[#allocation2 + $0xe8] sm:$0xff]
    %v206 = vld [vmem:[#allocation2 + $0x108] sm:$0xff]
    %v207 = vld [vmem:[#allocation2 + $0x128] sm:$0xff]
    %v208 = vld [vmem:[%s2 + $0x2] sm:$0x3]
    %v210 = vperm.slane %v208, 0
    %v211 = vperm.slane %v208, 1
    %v224 = vunpack.c.l.b16 %v198
    %v225 = vunpack.c.h.b16 %v198
    %v226 = vunpack.c.l.b16 %v199
    %v227 = vunpack.c.h.b16 %v199
    %v228 = vunpack.c.l.b16 %v200
    %v229 = vunpack.c.h.b16 %v200
    %v230 = vunpack.c.l.b16 %v201
    %v231 = vunpack.c.h.b16 %v201
    %v232 = vunpack.c.l.b16 %v202
    %v233 = vunpack.c.h.b16 %v202
    %v234 = vunpack.c.l.b16 %v203
    %v235 = vunpack.c.h.b16 %v203
    %v236 = vunpack.c.l.b16 %v204
    %v237 = vunpack.c.h.b16 %v204
    %v238 = vunpack.c.l.b16 %v205
    %v239 = vunpack.c.h.b16 %v205
    %v240 = vunpack.c.l.b16 %v206
    %v241 = vunpack.c.h.b16 %v206
    %v242 = vunpack.c.l.b16 %v207
    %v243 = vunpack.c.h.b16 %v207
    %v244 = vpack.c.b16 %v226, %v224
    %v245 = vpack.c.b16 %v227, %v225
    %v246 = vpack.c.b16 %v230, %v228
    %v247 = vpack.c.b16 %v231, %v229
    %v248 = vpack.c.b16 %v234, %v232
    %v249 = vpack.c.b16 %v235, %v233
    %v250 = vpack.c.b16 %v238, %v236
    %v251 = vpack.c.b16 %v239, %v237
    %v252 = vpack.c.b16 %v242, %v240
    %v253 = vpack.c.b16 %v243, %v241
    %264 = vmatpush.bf16.msra.mxu0 0
    %265 = vmatpush.bf16.msra.mxu0 0
    %266 = vmatpush.bf16.msra.mxu0 0
    %267 = vmatpush.bf16.msra.mxu0 %v252
    %268 = vmatpush.bf16.msra.mxu0 %v250
    %269 = vmatpush.bf16.msra.mxu0 %v248
    %270 = vmatpush.bf16.msra.mxu0 %v246
    %271 = vmatpush.bf16.msra.mxu0 %v244
    %272 = vmatmul.bf16.gmra.mxu0 %v130
    %v273 = vpop.f32.mrf.mxu0
    %v274 = vadd.f32 %v210, %v273
    %v275 = vpop.f32.mrf.mxu0
    %v276 = vadd.f32 %v210, %v275
    %277 = vdwg.mxu0
    %278 = vmatpush.bf16.msra.mxu0 0
    %279 = vmatpush.bf16.msra.mxu0 0
    %280 = vmatpush.bf16.msra.mxu0 0
    %281 = vmatpush.bf16.msra.mxu0 %v253
    %282 = vmatpush.bf16.msra.mxu0 %v251
    %283 = vmatpush.bf16.msra.mxu0 %v249
    %284 = vmatpush.bf16.msra.mxu0 %v247
    %285 = vmatpush.bf16.msra.mxu0 %v245
    %286 = vmatmul.bf16.gmra.mxu0 %v130
    %v287 = vpop.f32.mrf.mxu0
    %v288 = vadd.f32 %v211, %v287
    %v289 = vpop.f32.mrf.mxu0
    %v290 = vadd.f32 %v211, %v289
    %291 = vdwg.mxu0
    %v292 = vmax.f32 %v274, 0.0
    %v293 = vmax.f32 %v288, 0.0
    %v294 = vmax.f32 %v276, 0.0
    %v295 = vmax.f32 %v290, 0.0
    %v296 = vpack.c.bf16 %v294, %v292
    %v297 = vpack.c.bf16 %v295, %v293
    %v298 = vld [vmem:[#allocation4 + $0x80] sm:$0xf]
    %v299 = vld [vmem:[#allocation4 + $0x84] sm:$0xf]
    %v300 = vld [vmem:[#allocation4 + $0x88] sm:$0xf]
    %v301 = vld [vmem:[#allocation4 + $0x8c] sm:$0xf]
    %v302 = vld [vmem:[#allocation4 + $0x90] sm:$0xf]
    %v303 = vld [vmem:[#allocation4 + $0x94] sm:$0xf]
    %v304 = vld [vmem:[#allocation4 + $0x98] sm:$0xf]
    %v305 = vld [vmem:[#allocation4 + $0x9c] sm:$0xf]
    %v306 = vld [vmem:[#allocation4 + $0xa0] sm:$0xf]
    %v307 = vld [vmem:[#allocation4 + $0xa4] sm:$0xf]
    %v308 = vld [vmem:[#allocation4 + $0xa8] sm:$0xf]
    %v309 = vld [vmem:[#allocation4 + $0xac] sm:$0xf]
    %v310 = vld [vmem:[#allocation4 + $0xb0] sm:$0xf]
    %v311 = vld [vmem:[#allocation4 + $0xb4] sm:$0xf]
    %v312 = vld [vmem:[#allocation4 + $0xb8] sm:$0xf]
    %v313 = vld [vmem:[#allocation4 + $0xbc] sm:$0xf]
    %v314 = vld [vmem:[#allocation4 + $0xc0] sm:$0xf]
    %v315 = vld [vmem:[#allocation4 + $0xc4] sm:$0xf]
    %v316 = vld [vmem:[#allocation4 + $0xc8] sm:$0xf]
    %v317 = vld [vmem:[#allocation4 + $0xcc] sm:$0xf]
    %v318 = vld [vmem:[#allocation4 + $0xd0] sm:$0xf]
    %v319 = vld [vmem:[#allocation4 + $0xd4] sm:$0xf]
    %v320 = vld [vmem:[#allocation4 + $0xd8] sm:$0xf]
    %v321 = vld [vmem:[#allocation4 + $0xdc] sm:$0xf]
    %v322 = vld [vmem:[#allocation4 + $0xe0] sm:$0xf]
    %v323 = vld [vmem:[#allocation4 + $0xe4] sm:$0xf]
    %v324 = vld [vmem:[#allocation4 + $0xe8] sm:$0xf]
    %v325 = vld [vmem:[#allocation4 + $0xec] sm:$0xf]
    %v326 = vld [vmem:[#allocation4 + $0xf0] sm:$0xf]
    %v327 = vld [vmem:[#allocation4 + $0xf4] sm:$0xf]
    %v328 = vld [vmem:[#allocation4 + $0xf8] sm:$0xf]
    %v329 = vld [vmem:[#allocation4 + $0xfc] sm:$0xf]
    %v362 = vunpack.c.l.b16 %v298
    %v363 = vunpack.c.l.b16 %v299
    %v364 = vunpack.c.l.b16 %v300
    %v365 = vunpack.c.l.b16 %v301
    %v366 = vunpack.c.l.b16 %v302
    %v367 = vunpack.c.l.b16 %v303
    %v368 = vunpack.c.l.b16 %v304
    %v369 = vunpack.c.l.b16 %v305
    %v370 = vunpack.c.l.b16 %v306
    %v371 = vunpack.c.l.b16 %v307
    %v372 = vunpack.c.l.b16 %v308
    %v373 = vunpack.c.l.b16 %v309
    %v374 = vunpack.c.l.b16 %v310
    %v375 = vunpack.c.l.b16 %v311
    %v376 = vunpack.c.l.b16 %v312
    %v377 = vunpack.c.l.b16 %v313
    %v378 = vunpack.c.l.b16 %v314
    %v379 = vunpack.c.l.b16 %v315
    %v380 = vunpack.c.l.b16 %v316
    %v381 = vunpack.c.l.b16 %v317
    %v382 = vunpack.c.l.b16 %v318
    %v383 = vunpack.c.l.b16 %v319
    %v384 = vunpack.c.l.b16 %v320
    %v385 = vunpack.c.l.b16 %v321
    %v386 = vunpack.c.l.b16 %v322
    %v387 = vunpack.c.l.b16 %v323
    %v388 = vunpack.c.l.b16 %v324
    %v389 = vunpack.c.l.b16 %v325
    %v390 = vunpack.c.l.b16 %v326
    %v391 = vunpack.c.l.b16 %v327
    %v392 = vunpack.c.l.b16 %v328
    %v393 = vunpack.c.l.b16 %v329
    %v394 = vpack.c.b16 %v363, %v362
    %v395 = vpack.c.b16 %v365, %v364
    %v396 = vpack.c.b16 %v367, %v366
    %v397 = vpack.c.b16 %v369, %v368
    %v398 = vpack.c.b16 %v371, %v370
    %v399 = vpack.c.b16 %v373, %v372
    %v400 = vpack.c.b16 %v375, %v374
    %v401 = vpack.c.b16 %v377, %v376
    %v402 = vpack.c.b16 %v379, %v378
    %v403 = vpack.c.b16 %v381, %v380
    %v404 = vpack.c.b16 %v383, %v382
    %v405 = vpack.c.b16 %v385, %v384
    %v406 = vpack.c.b16 %v387, %v386
    %v407 = vpack.c.b16 %v389, %v388
    %v408 = vpack.c.b16 %v391, %v390
    %v409 = vpack.c.b16 %v393, %v392
    %426 = vmatpush.bf16.msra.mxu0 %v401
    %427 = vmatpush.bf16.msra.mxu0 %v400
    %428 = vmatpush.bf16.msra.mxu0 %v399
    %429 = vmatpush.bf16.msra.mxu0 %v398
    %430 = vmatpush.bf16.msra.mxu0 %v397
    %431 = vmatpush.bf16.msra.mxu0 %v396
    %432 = vmatpush.bf16.msra.mxu0 %v395
    %433 = vmatpush.bf16.msra.mxu0 %v394
    %434 = vmatmul.bf16.gmra.mxu0 %v296
    %v435 = vpop.f32.mrf.mxu0
    %v436 = vadd.f32 0.0, %v435
    %v437 = vpop.f32.mrf.mxu0
    %v438 = vadd.f32 0.0, %v437
    %439 = vdwg.mxu0
    %440 = vmatpush.bf16.msra.mxu0 %v409
    %441 = vmatpush.bf16.msra.mxu0 %v408
    %442 = vmatpush.bf16.msra.mxu0 %v407
    %443 = vmatpush.bf16.msra.mxu0 %v406
    %444 = vmatpush.bf16.msra.mxu0 %v405
    %445 = vmatpush.bf16.msra.mxu0 %v404
    %446 = vmatpush.bf16.msra.mxu0 %v403
    %447 = vmatpush.bf16.msra.mxu0 %v402
    %448 = vmatmul.bf16.gmra.mxu0 %v297
    %v449 = vpop.f32.mrf.mxu0
    %v450 = vadd.f32 %v436, %v449
    %v451 = vpop.f32.mrf.mxu0
    %v452 = vadd.f32 %v438, %v451
    %453 = vdwg.mxu0
    %v486 = vunpack.c.l.b16 %v166
    %v487 = vunpack.c.l.b16 %v167
    %v488 = vunpack.c.l.b16 %v168
    %v489 = vunpack.c.l.b16 %v169
    %v490 = vunpack.c.l.b16 %v170
    %v491 = vunpack.c.l.b16 %v171
    %v492 = vunpack.c.l.b16 %v172
    %v493 = vunpack.c.l.b16 %v173
    %v494 = vunpack.c.l.b16 %v174
    %v495 = vunpack.c.l.b16 %v175
    %v496 = vunpack.c.l.b16 %v176
    %v497 = vunpack.c.l.b16 %v177
    %v498 = vunpack.c.l.b16 %v178
    %v499 = vunpack.c.l.b16 %v179
    %v500 = vunpack.c.l.b16 %v180
    %v501 = vunpack.c.l.b16 %v181
    %v502 = vunpack.c.l.b16 %v182
    %v503 = vunpack.c.l.b16 %v183
    %v504 = vunpack.c.l.b16 %v184
    %v505 = vunpack.c.l.b16 %v185
    %v506 = vunpack.c.l.b16 %v186
    %v507 = vunpack.c.l.b16 %v187
    %v508 = vunpack.c.l.b16 %v188
    %v509 = vunpack.c.l.b16 %v189
    %v510 = vunpack.c.l.b16 %v190
    %v511 = vunpack.c.l.b16 %v191
    %v512 = vunpack.c.l.b16 %v192
    %v513 = vunpack.c.l.b16 %v193
    %v514 = vunpack.c.l.b16 %v194
    %v515 = vunpack.c.l.b16 %v195
    %v516 = vunpack.c.l.b16 %v196
    %v517 = vunpack.c.l.b16 %v197
    %v518 = vpack.c.b16 %v487, %v486
    %v519 = vpack.c.b16 %v489, %v488
    %v520 = vpack.c.b16 %v491, %v490
    %v521 = vpack.c.b16 %v493, %v492
    %v522 = vpack.c.b16 %v495, %v494
    %v523 = vpack.c.b16 %v497, %v496
    %v524 = vpack.c.b16 %v499, %v498
    %v525 = vpack.c.b16 %v501, %v500
    %v526 = vpack.c.b16 %v503, %v502
    %v527 = vpack.c.b16 %v505, %v504
    %v528 = vpack.c.b16 %v507, %v506
    %v529 = vpack.c.b16 %v509, %v508
    %v530 = vpack.c.b16 %v511, %v510
    %v531 = vpack.c.b16 %v513, %v512
    %v532 = vpack.c.b16 %v515, %v514
    %v533 = vpack.c.b16 %v517, %v516
    %550 = vmatpush.bf16.msra.mxu0 %v525
    %551 = vmatpush.bf16.msra.mxu0 %v524
    %552 = vmatpush.bf16.msra.mxu0 %v523
    %553 = vmatpush.bf16.msra.mxu0 %v522
    %554 = vmatpush.bf16.msra.mxu0 %v521
    %555 = vmatpush.bf16.msra.mxu0 %v520
    %556 = vmatpush.bf16.msra.mxu0 %v519
    %557 = vmatpush.bf16.msra.mxu0 %v518
    %558 = vmatmul.bf16.gmra.mxu0 %v164
    %v559 = vpop.f32.mrf.mxu0
    %v560 = vadd.f32 %v450, %v559
    %v561 = vpop.f32.mrf.mxu0
    %v562 = vadd.f32 %v452, %v561
    %563 = vdwg.mxu0
    %564 = vmatpush.bf16.msra.mxu0 %v533
    %565 = vmatpush.bf16.msra.mxu0 %v532
    %566 = vmatpush.bf16.msra.mxu0 %v531
    %567 = vmatpush.bf16.msra.mxu0 %v530
    %568 = vmatpush.bf16.msra.mxu0 %v529
    %569 = vmatpush.bf16.msra.mxu0 %v528
    %570 = vmatpush.bf16.msra.mxu0 %v527
    %571 = vmatpush.bf16.msra.mxu0 %v526
    %572 = vmatmul.bf16.gmra.mxu0 %v165
    %v573 = vpop.f32.mrf.mxu0
    %v574 = vadd.f32 %v560, %v573
    %v575 = vpop.f32.mrf.mxu0
    %v576 = vadd.f32 %v562, %v575
    %577 = vdwg.mxu0
    %v578 = vld [vmem:[#allocation2 + $0x10] sm:$0xff]
    %v579 = vld [vmem:[#allocation2 + $0x30] sm:$0xff]
    %v580 = vld [vmem:[#allocation2 + $0x50] sm:$0xff]
    %v581 = vld [vmem:[#allocation2 + $0x70] sm:$0xff]
    %v582 = vld [vmem:[#allocation2 + $0x90] sm:$0xff]
    %v583 = vld [vmem:[#allocation2 + $0xb0] sm:$0xff]
    %v584 = vld [vmem:[#allocation2 + $0xd0] sm:$0xff]
    %v585 = vld [vmem:[#allocation2 + $0xf0] sm:$0xff]
    %v586 = vld [vmem:[#allocation2 + $0x110] sm:$0xff]
    %v587 = vld [vmem:[#allocation2 + $0x130] sm:$0xff]
    %v588 = vld [vmem:[%s2 + $0x4] sm:$0x3]
    %v590 = vperm.slane %v588, 0
    %v591 = vperm.slane %v588, 1
    %v604 = vunpack.c.l.b16 %v578
    %v605 = vunpack.c.h.b16 %v578
    %v606 = vunpack.c.l.b16 %v579
    %v607 = vunpack.c.h.b16 %v579
    %v608 = vunpack.c.l.b16 %v580
    %v609 = vunpack.c.h.b16 %v580
    %v610 = vunpack.c.l.b16 %v581
    %v611 = vunpack.c.h.b16 %v581
    %v612 = vunpack.c.l.b16 %v582
    %v613 = vunpack.c.h.b16 %v582
    %v614 = vunpack.c.l.b16 %v583
    %v615 = vunpack.c.h.b16 %v583
    %v616 = vunpack.c.l.b16 %v584
    %v617 = vunpack.c.h.b16 %v584
    %v618 = vunpack.c.l.b16 %v585
    %v619 = vunpack.c.h.b16 %v585
    %v620 = vunpack.c.l.b16 %v586
    %v621 = vunpack.c.h.b16 %v586
    %v622 = vunpack.c.l.b16 %v587
    %v623 = vunpack.c.h.b16 %v587
    %v624 = vpack.c.b16 %v606, %v604
    %v625 = vpack.c.b16 %v607, %v605
    %v626 = vpack.c.b16 %v610, %v608
    %v627 = vpack.c.b16 %v611, %v609
    %v628 = vpack.c.b16 %v614, %v612
    %v629 = vpack.c.b16 %v615, %v613
    %v630 = vpack.c.b16 %v618, %v616
    %v631 = vpack.c.b16 %v619, %v617
    %v632 = vpack.c.b16 %v622, %v620
    %v633 = vpack.c.b16 %v623, %v621
    %644 = vmatpush.bf16.msra.mxu0 0
    %645 = vmatpush.bf16.msra.mxu0 0
    %646 = vmatpush.bf16.msra.mxu0 0
    %647 = vmatpush.bf16.msra.mxu0 %v632
    %648 = vmatpush.bf16.msra.mxu0 %v630
    %649 = vmatpush.bf16.msra.mxu0 %v628
    %650 = vmatpush.bf16.msra.mxu0 %v626
    %651 = vmatpush.bf16.msra.mxu0 %v624
    %652 = vmatmul.bf16.gmra.mxu0 %v130
    %v653 = vpop.f32.mrf.mxu0
    %v654 = vadd.f32 %v590, %v653
    %v655 = vpop.f32.mrf.mxu0
    %v656 = vadd.f32 %v590, %v655
    %657 = vdwg.mxu0
    %658 = vmatpush.bf16.msra.mxu0 0
    %659 = vmatpush.bf16.msra.mxu0 0
    %660 = vmatpush.bf16.msra.mxu0 0
    %661 = vmatpush.bf16.msra.mxu0 %v633
    %662 = vmatpush.bf16.msra.mxu0 %v631
    %663 = vmatpush.bf16.msra.mxu0 %v629
    %664 = vmatpush.bf16.msra.mxu0 %v627
    %665 = vmatpush.bf16.msra.mxu0 %v625
    %666 = vmatmul.bf16.gmra.mxu0 %v130
    %v667 = vpop.f32.mrf.mxu0
    %v668 = vadd.f32 %v591, %v667
    %v669 = vpop.f32.mrf.mxu0
    %v670 = vadd.f32 %v591, %v669
    %671 = vdwg.mxu0
    %v672 = vmax.f32 %v654, 0.0
    %v673 = vmax.f32 %v668, 0.0
    %v674 = vmax.f32 %v656, 0.0
    %v675 = vmax.f32 %v670, 0.0
    %v676 = vpack.c.bf16 %v674, %v672
    %v677 = vpack.c.bf16 %v675, %v673
    %v678 = vld [vmem:[#allocation4 + $0x100] sm:$0xf]
    %v679 = vld [vmem:[#allocation4 + $0x104] sm:$0xf]
    %v680 = vld [vmem:[#allocation4 + $0x108] sm:$0xf]
    %v681 = vld [vmem:[#allocation4 + $0x10c] sm:$0xf]
    %v682 = vld [vmem:[#allocation4 + $0x110] sm:$0xf]
    %v683 = vld [vmem:[#allocation4 + $0x114] sm:$0xf]
    %v684 = vld [vmem:[#allocation4 + $0x118] sm:$0xf]
    %v685 = vld [vmem:[#allocation4 + $0x11c] sm:$0xf]
    %v686 = vld [vmem:[#allocation4 + $0x120] sm:$0xf]
    %v687 = vld [vmem:[#allocation4 + $0x124] sm:$0xf]
    %v688 = vld [vmem:[#allocation4 + $0x128] sm:$0xf]
    %v689 = vld [vmem:[#allocation4 + $0x12c] sm:$0xf]
    %v690 = vld [vmem:[#allocation4 + $0x130] sm:$0xf]
    %v691 = vld [vmem:[#allocation4 + $0x134] sm:$0xf]
    %v692 = vld [vmem:[#allocation4 + $0x138] sm:$0xf]
    %v693 = vld [vmem:[#allocation4 + $0x13c] sm:$0xf]
    %v694 = vld [vmem:[#allocation4 + $0x140] sm:$0xf]
    %v695 = vld [vmem:[#allocation4 + $0x144] sm:$0xf]
    %v696 = vld [vmem:[#allocation4 + $0x148] sm:$0xf]
    %v697 = vld [vmem:[#allocation4 + $0x14c] sm:$0xf]
    %v698 = vld [vmem:[#allocation4 + $0x150] sm:$0xf]
    %v699 = vld [vmem:[#allocation4 + $0x154] sm:$0xf]
    %v700 = vld [vmem:[#allocation4 + $0x158] sm:$0xf]
    %v701 = vld [vmem:[#allocation4 + $0x15c] sm:$0xf]
    %v702 = vld [vmem:[#allocation4 + $0x160] sm:$0xf]
    %v703 = vld [vmem:[#allocation4 + $0x164] sm:$0xf]
    %v704 = vld [vmem:[#allocation4 + $0x168] sm:$0xf]
    %v705 = vld [vmem:[#allocation4 + $0x16c] sm:$0xf]
    %v706 = vld [vmem:[#allocation4 + $0x170] sm:$0xf]
    %v707 = vld [vmem:[#allocation4 + $0x174] sm:$0xf]
    %v708 = vld [vmem:[#allocation4 + $0x178] sm:$0xf]
    %v709 = vld [vmem:[#allocation4 + $0x17c] sm:$0xf]
    %v742 = vunpack.c.l.b16 %v678
    %v743 = vunpack.c.l.b16 %v679
    %v744 = vunpack.c.l.b16 %v680
    %v745 = vunpack.c.l.b16 %v681
    %v746 = vunpack.c.l.b16 %v682
    %v747 = vunpack.c.l.b16 %v683
    %v748 = vunpack.c.l.b16 %v684
    %v749 = vunpack.c.l.b16 %v685
    %v750 = vunpack.c.l.b16 %v686
    %v751 = vunpack.c.l.b16 %v687
    %v752 = vunpack.c.l.b16 %v688
    %v753 = vunpack.c.l.b16 %v689
    %v754 = vunpack.c.l.b16 %v690
    %v755 = vunpack.c.l.b16 %v691
    %v756 = vunpack.c.l.b16 %v692
    %v757 = vunpack.c.l.b16 %v693
    %v758 = vunpack.c.l.b16 %v694
    %v759 = vunpack.c.l.b16 %v695
    %v760 = vunpack.c.l.b16 %v696
    %v761 = vunpack.c.l.b16 %v697
    %v762 = vunpack.c.l.b16 %v698
    %v763 = vunpack.c.l.b16 %v699
    %v764 = vunpack.c.l.b16 %v700
    %v765 = vunpack.c.l.b16 %v701
    %v766 = vunpack.c.l.b16 %v702
    %v767 = vunpack.c.l.b16 %v703
    %v768 = vunpack.c.l.b16 %v704
    %v769 = vunpack.c.l.b16 %v705
    %v770 = vunpack.c.l.b16 %v706
    %v771 = vunpack.c.l.b16 %v707
    %v772 = vunpack.c.l.b16 %v708
    %v773 = vunpack.c.l.b16 %v709
    %v774 = vpack.c.b16 %v743, %v742
    %v775 = vpack.c.b16 %v745, %v744
    %v776 = vpack.c.b16 %v747, %v746
    %v777 = vpack.c.b16 %v749, %v748
    %v778 = vpack.c.b16 %v751, %v750
    %v779 = vpack.c.b16 %v753, %v752
    %v780 = vpack.c.b16 %v755, %v754
    %v781 = vpack.c.b16 %v757, %v756
    %v782 = vpack.c.b16 %v759, %v758
    %v783 = vpack.c.b16 %v761, %v760
    %v784 = vpack.c.b16 %v763, %v762
    %v785 = vpack.c.b16 %v765, %v764
    %v786 = vpack.c.b16 %v767, %v766
    %v787 = vpack.c.b16 %v769, %v768
    %v788 = vpack.c.b16 %v771, %v770
    %v789 = vpack.c.b16 %v773, %v772
    %806 = vmatpush.bf16.msra.mxu0 %v781
    %807 = vmatpush.bf16.msra.mxu0 %v780
    %808 = vmatpush.bf16.msra.mxu0 %v779
    %809 = vmatpush.bf16.msra.mxu0 %v778
    %810 = vmatpush.bf16.msra.mxu0 %v777
    %811 = vmatpush.bf16.msra.mxu0 %v776
    %812 = vmatpush.bf16.msra.mxu0 %v775
    %813 = vmatpush.bf16.msra.mxu0 %v774
    %814 = vmatmul.bf16.gmra.mxu0 %v676
    %v815 = vpop.f32.mrf.mxu0
    %v816 = vadd.f32 0.0, %v815
    %v817 = vpop.f32.mrf.mxu0
    %v818 = vadd.f32 0.0, %v817
    %819 = vdwg.mxu0
    %820 = vmatpush.bf16.msra.mxu0 %v789
    %821 = vmatpush.bf16.msra.mxu0 %v788
    %822 = vmatpush.bf16.msra.mxu0 %v787
    %823 = vmatpush.bf16.msra.mxu0 %v786
    %824 = vmatpush.bf16.msra.mxu0 %v785
    %825 = vmatpush.bf16.msra.mxu0 %v784
    %826 = vmatpush.bf16.msra.mxu0 %v783
    %827 = vmatpush.bf16.msra.mxu0 %v782
    %828 = vmatmul.bf16.gmra.mxu0 %v677
    %v829 = vpop.f32.mrf.mxu0
    %v830 = vadd.f32 %v816, %v829
    %v831 = vpop.f32.mrf.mxu0
    %v832 = vadd.f32 %v818, %v831
    %833 = vdwg.mxu0
    %v834 = vadd.f32 %v574, %v830
    %v835 = vadd.f32 %v576, %v832
    %v836 = vld [vmem:[#allocation2 + $0x18] sm:$0xff]
    %v837 = vld [vmem:[#allocation2 + $0x38] sm:$0xff]
    %v838 = vld [vmem:[#allocation2 + $0x58] sm:$0xff]
    %v839 = vld [vmem:[#allocation2 + $0x78] sm:$0xff]
    %v840 = vld [vmem:[#allocation2 + $0x98] sm:$0xff]
    %v841 = vld [vmem:[#allocation2 + $0xb8] sm:$0xff]
    %v842 = vld [vmem:[#allocation2 + $0xd8] sm:$0xff]
    %v843 = vld [vmem:[#allocation2 + $0xf8] sm:$0xff]
    %v844 = vld [vmem:[#allocation2 + $0x118] sm:$0xff]
    %v845 = vld [vmem:[#allocation2 + $0x138] sm:$0xff]
    %v846 = vld [vmem:[%s2 + $0x6] sm:$0x3]
    %v848 = vperm.slane %v846, 0
    %v849 = vperm.slane %v846, 1
    %v862 = vunpack.c.l.b16 %v836
    %v863 = vunpack.c.h.b16 %v836
    %v864 = vunpack.c.l.b16 %v837
    %v865 = vunpack.c.h.b16 %v837
    %v866 = vunpack.c.l.b16 %v838
    %v867 = vunpack.c.h.b16 %v838
    %v868 = vunpack.c.l.b16 %v839
    %v869 = vunpack.c.h.b16 %v839
    %v870 = vunpack.c.l.b16 %v840
    %v871 = vunpack.c.h.b16 %v840
    %v872 = vunpack.c.l.b16 %v841
    %v873 = vunpack.c.h.b16 %v841
    %v874 = vunpack.c.l.b16 %v842
    %v875 = vunpack.c.h.b16 %v842
    %v876 = vunpack.c.l.b16 %v843
    %v877 = vunpack.c.h.b16 %v843
    %v878 = vunpack.c.l.b16 %v844
    %v879 = vunpack.c.h.b16 %v844
    %v880 = vunpack.c.l.b16 %v845
    %v881 = vunpack.c.h.b16 %v845
    %v882 = vpack.c.b16 %v864, %v862
    %v883 = vpack.c.b16 %v865, %v863
    %v884 = vpack.c.b16 %v868, %v866
    %v885 = vpack.c.b16 %v869, %v867
    %v886 = vpack.c.b16 %v872, %v870
    %v887 = vpack.c.b16 %v873, %v871
    %v888 = vpack.c.b16 %v876, %v874
    %v889 = vpack.c.b16 %v877, %v875
    %v890 = vpack.c.b16 %v880, %v878
    %v891 = vpack.c.b16 %v881, %v879
    %902 = vmatpush.bf16.msra.mxu0 0
    %903 = vmatpush.bf16.msra.mxu0 0
    %904 = vmatpush.bf16.msra.mxu0 0
    %905 = vmatpush.bf16.msra.mxu0 %v890
    %906 = vmatpush.bf16.msra.mxu0 %v888
    %907 = vmatpush.bf16.msra.mxu0 %v886
    %908 = vmatpush.bf16.msra.mxu0 %v884
    %909 = vmatpush.bf16.msra.mxu0 %v882
    %910 = vmatmul.bf16.gmra.mxu0 %v130
    %v911 = vpop.f32.mrf.mxu0
    %v912 = vadd.f32 %v848, %v911
    %v913 = vpop.f32.mrf.mxu0
    %v914 = vadd.f32 %v848, %v913
    %915 = vdwg.mxu0
    %916 = vmatpush.bf16.msra.mxu0 0
    %917 = vmatpush.bf16.msra.mxu0 0
    %918 = vmatpush.bf16.msra.mxu0 0
    %919 = vmatpush.bf16.msra.mxu0 %v891
    %920 = vmatpush.bf16.msra.mxu0 %v889
    %921 = vmatpush.bf16.msra.mxu0 %v887
    %922 = vmatpush.bf16.msra.mxu0 %v885
    %923 = vmatpush.bf16.msra.mxu0 %v883
    %924 = vmatmul.bf16.gmra.mxu0 %v130
    %v925 = vpop.f32.mrf.mxu0
    %v926 = vadd.f32 %v849, %v925
    %v927 = vpop.f32.mrf.mxu0
    %v928 = vadd.f32 %v849, %v927
    %929 = vdwg.mxu0
    %v930 = vmax.f32 %v912, 0.0
    %v931 = vmax.f32 %v926, 0.0
    %v932 = vmax.f32 %v914, 0.0
    %v933 = vmax.f32 %v928, 0.0
    %v934 = vpack.c.bf16 %v932, %v930
    %v935 = vpack.c.bf16 %v933, %v931
    %v936 = vld [vmem:[#allocation4 + $0x180] sm:$0xf]
    %v937 = vld [vmem:[#allocation4 + $0x184] sm:$0xf]
    %v938 = vld [vmem:[#allocation4 + $0x188] sm:$0xf]
    %v939 = vld [vmem:[#allocation4 + $0x18c] sm:$0xf]
    %v940 = vld [vmem:[#allocation4 + $0x190] sm:$0xf]
    %v941 = vld [vmem:[#allocation4 + $0x194] sm:$0xf]
    %v942 = vld [vmem:[#allocation4 + $0x198] sm:$0xf]
    %v943 = vld [vmem:[#allocation4 + $0x19c] sm:$0xf]
    %v944 = vld [vmem:[#allocation4 + $0x1a0] sm:$0xf]
    %v945 = vld [vmem:[#allocation4 + $0x1a4] sm:$0xf]
    %v946 = vld [vmem:[#allocation4 + $0x1a8] sm:$0xf]
    %v947 = vld [vmem:[#allocation4 + $0x1ac] sm:$0xf]
    %v948 = vld [vmem:[#allocation4 + $0x1b0] sm:$0xf]
    %v949 = vld [vmem:[#allocation4 + $0x1b4] sm:$0xf]
    %v950 = vld [vmem:[#allocation4 + $0x1b8] sm:$0xf]
    %v951 = vld [vmem:[#allocation4 + $0x1bc] sm:$0xf]
    %v952 = vld [vmem:[#allocation4 + $0x1c0] sm:$0xf]
    %v953 = vld [vmem:[#allocation4 + $0x1c4] sm:$0xf]
    %v954 = vld [vmem:[#allocation4 + $0x1c8] sm:$0xf]
    %v955 = vld [vmem:[#allocation4 + $0x1cc] sm:$0xf]
    %v956 = vld [vmem:[#allocation4 + $0x1d0] sm:$0xf]
    %v957 = vld [vmem:[#allocation4 + $0x1d4] sm:$0xf]
    %v958 = vld [vmem:[#allocation4 + $0x1d8] sm:$0xf]
    %v959 = vld [vmem:[#allocation4 + $0x1dc] sm:$0xf]
    %v960 = vld [vmem:[#allocation4 + $0x1e0] sm:$0xf]
    %v961 = vld [vmem:[#allocation4 + $0x1e4] sm:$0xf]
    %v962 = vld [vmem:[#allocation4 + $0x1e8] sm:$0xf]
    %v963 = vld [vmem:[#allocation4 + $0x1ec] sm:$0xf]
    %v964 = vld [vmem:[#allocation4 + $0x1f0] sm:$0xf]
    %v965 = vld [vmem:[#allocation4 + $0x1f4] sm:$0xf]
    %v966 = vld [vmem:[#allocation4 + $0x1f8] sm:$0xf]
    %v967 = vld [vmem:[#allocation4 + $0x1fc] sm:$0xf]
    %v1000 = vunpack.c.l.b16 %v936
    %v1001 = vunpack.c.l.b16 %v937
    %v1002 = vunpack.c.l.b16 %v938
    %v1003 = vunpack.c.l.b16 %v939
    %v1004 = vunpack.c.l.b16 %v940
    %v1005 = vunpack.c.l.b16 %v941
    %v1006 = vunpack.c.l.b16 %v942
    %v1007 = vunpack.c.l.b16 %v943
    %v1008 = vunpack.c.l.b16 %v944
    %v1009 = vunpack.c.l.b16 %v945
    %v1010 = vunpack.c.l.b16 %v946
    %v1011 = vunpack.c.l.b16 %v947
    %v1012 = vunpack.c.l.b16 %v948
    %v1013 = vunpack.c.l.b16 %v949
    %v1014 = vunpack.c.l.b16 %v950
    %v1015 = vunpack.c.l.b16 %v951
    %v1016 = vunpack.c.l.b16 %v952
    %v1017 = vunpack.c.l.b16 %v953
    %v1018 = vunpack.c.l.b16 %v954
    %v1019 = vunpack.c.l.b16 %v955
    %v1020 = vunpack.c.l.b16 %v956
    %v1021 = vunpack.c.l.b16 %v957
    %v1022 = vunpack.c.l.b16 %v958
    %v1023 = vunpack.c.l.b16 %v959
    %v1024 = vunpack.c.l.b16 %v960
    %v1025 = vunpack.c.l.b16 %v961
    %v1026 = vunpack.c.l.b16 %v962
    %v1027 = vunpack.c.l.b16 %v963
    %v1028 = vunpack.c.l.b16 %v964
    %v1029 = vunpack.c.l.b16 %v965
    %v1030 = vunpack.c.l.b16 %v966
    %v1031 = vunpack.c.l.b16 %v967
    %v1032 = vpack.c.b16 %v1001, %v1000
    %v1033 = vpack.c.b16 %v1003, %v1002
    %v1034 = vpack.c.b16 %v1005, %v1004
    %v1035 = vpack.c.b16 %v1007, %v1006
    %v1036 = vpack.c.b16 %v1009, %v1008
    %v1037 = vpack.c.b16 %v1011, %v1010
    %v1038 = vpack.c.b16 %v1013, %v1012
    %v1039 = vpack.c.b16 %v1015, %v1014
    %v1040 = vpack.c.b16 %v1017, %v1016
    %v1041 = vpack.c.b16 %v1019, %v1018
    %v1042 = vpack.c.b16 %v1021, %v1020
    %v1043 = vpack.c.b16 %v1023, %v1022
    %v1044 = vpack.c.b16 %v1025, %v1024
    %v1045 = vpack.c.b16 %v1027, %v1026
    %v1046 = vpack.c.b16 %v1029, %v1028
    %v1047 = vpack.c.b16 %v1031, %v1030
    %1064 = vmatpush.bf16.msra.mxu0 %v1039
    %1065 = vmatpush.bf16.msra.mxu0 %v1038
    %1066 = vmatpush.bf16.msra.mxu0 %v1037
    %1067 = vmatpush.bf16.msra.mxu0 %v1036
    %1068 = vmatpush.bf16.msra.mxu0 %v1035
    %1069 = vmatpush.bf16.msra.mxu0 %v1034
    %1070 = vmatpush.bf16.msra.mxu0 %v1033
    %1071 = vmatpush.bf16.msra.mxu0 %v1032
    %1072 = vmatmul.bf16.gmra.mxu0 %v934
    %v1073 = vpop.f32.mrf.mxu0
    %v1074 = vadd.f32 0.0, %v1073
    %v1075 = vpop.f32.mrf.mxu0
    %v1076 = vadd.f32 0.0, %v1075
    %1077 = vdwg.mxu0
    %1078 = vmatpush.bf16.msra.mxu0 %v1047
    %1079 = vmatpush.bf16.msra.mxu0 %v1046
    %1080 = vmatpush.bf16.msra.mxu0 %v1045
    %1081 = vmatpush.bf16.msra.mxu0 %v1044
    %1082 = vmatpush.bf16.msra.mxu0 %v1043
    %1083 = vmatpush.bf16.msra.mxu0 %v1042
    %1084 = vmatpush.bf16.msra.mxu0 %v1041
    %1085 = vmatpush.bf16.msra.mxu0 %v1040
    %1086 = vmatmul.bf16.gmra.mxu0 %v935
    %v1087 = vpop.f32.mrf.mxu0
    %v1088 = vadd.f32 %v1074, %v1087
    %v1089 = vpop.f32.mrf.mxu0
    %v1090 = vadd.f32 %v1076, %v1089
    %1091 = vdwg.mxu0
    %v1092 = vadd.f32 %v834, %v1088
    %v1093 = vadd.f32 %v835, %v1090
    %v1094 = vld [vmem:[%s4] sm:$0x1]
    %v1096 = vperm.slane %v1094, 0
    %v1098 = vadd.f32 %v1092, %v1096
    %v1099 = vadd.f32 %v1093, %v1096
    %v1100 = vmax.f32 %v1098, 0.0
    %v1101 = vmax.f32 %v1099, 0.0
    %v1102 = vpack.c.bf16 %v1101, %v1100
    %v1103 = vld [vmem:[%s5] sm:$0xf]
    %v1104 = vld [vmem:[%s5 + $0x4] sm:$0xf]
    %v1105 = vld [vmem:[%s5 + $0x8] sm:$0xf]
    %v1106 = vld [vmem:[%s5 + $0xc] sm:$0xf]
    %v1107 = vld [vmem:[%s5 + $0x10] sm:$0xf]
    %v1108 = vld [vmem:[%s5 + $0x14] sm:$0xf]
    %v1109 = vld [vmem:[%s5 + $0x18] sm:$0xf]
    %v1110 = vld [vmem:[%s5 + $0x1c] sm:$0xf]
    %v1111 = vld [vmem:[%s5 + $0x20] sm:$0xf]
    %v1112 = vld [vmem:[%s5 + $0x24] sm:$0xf]
    %v1113 = vld [vmem:[%s5 + $0x28] sm:$0xf]
    %v1114 = vld [vmem:[%s5 + $0x2c] sm:$0xf]
    %v1115 = vld [vmem:[%s5 + $0x30] sm:$0xf]
    %v1116 = vld [vmem:[%s5 + $0x34] sm:$0xf]
    %v1117 = vld [vmem:[%s5 + $0x38] sm:$0xf]
    %v1118 = vld [vmem:[%s5 + $0x3c] sm:$0xf]
    %v1119 = vld [vmem:[%s6] sm:$0x1]
    %v1121 = vperm.slane %v1119, 0
    %v1139 = vunpack.c.l.b16 %v1103
    %v1140 = vunpack.c.l.b16 %v1104
    %v1141 = vunpack.c.l.b16 %v1105
    %v1142 = vunpack.c.l.b16 %v1106
    %v1143 = vunpack.c.l.b16 %v1107
    %v1144 = vunpack.c.l.b16 %v1108
    %v1145 = vunpack.c.l.b16 %v1109
    %v1146 = vunpack.c.l.b16 %v1110
    %v1147 = vunpack.c.l.b16 %v1111
    %v1148 = vunpack.c.l.b16 %v1112
    %v1149 = vunpack.c.l.b16 %v1113
    %v1150 = vunpack.c.l.b16 %v1114
    %v1151 = vunpack.c.l.b16 %v1115
    %v1152 = vunpack.c.l.b16 %v1116
    %v1153 = vunpack.c.l.b16 %v1117
    %v1154 = vunpack.c.l.b16 %v1118
    %v1155 = vpack.c.b16 %v1140, %v1139
    %v1156 = vpack.c.b16 %v1142, %v1141
    %v1157 = vpack.c.b16 %v1144, %v1143
    %v1158 = vpack.c.b16 %v1146, %v1145
    %v1159 = vpack.c.b16 %v1148, %v1147
    %v1160 = vpack.c.b16 %v1150, %v1149
    %v1161 = vpack.c.b16 %v1152, %v1151
    %v1162 = vpack.c.b16 %v1154, %v1153
    %1171 = vmatpush.bf16.msra.mxu0 %v1162
    %1172 = vmatpush.bf16.msra.mxu0 %v1161
    %1173 = vmatpush.bf16.msra.mxu0 %v1160
    %1174 = vmatpush.bf16.msra.mxu0 %v1159
    %1175 = vmatpush.bf16.msra.mxu0 %v1158
    %1176 = vmatpush.bf16.msra.mxu0 %v1157
    %1177 = vmatpush.bf16.msra.mxu0 %v1156
    %1178 = vmatpush.bf16.msra.mxu0 %v1155
    %1179 = vmatmul.bf16.gmra.mxu0 %v1102
    %v1180 = vpop.f32.mrf.mxu0
    %v1181 = vadd.f32 %v1121, %v1180
    %v1182 = vpop.f32.mrf.mxu0
    %v1183 = vadd.f32 %v1121, %v1182
    %1184 = vdwg.mxu0
    %vm1185 = vcmask 64512
    %1186 = vst.msk [vmem:[%s7] sm:$0xff] %vm1185, %v1181
    %1187 = vst.msk [vmem:[%s7 + $0x8] sm:$0xff] %vm1185, %v1183
    // Predicated region
    $region38: #{sr_model_forward.1} parent=1 // pred_check
      _
    $region39: #{sr_model_forward.1} parent=1 // pred_check_branch
      %1189 = sbr.rel (0) target = $region41
    $region40: #{sr_model_forward.1} parent=1 // pred_region
      _
    $region41: #{sr_model_forward.1} parent=1 // pred_fallthru
      _
    // Predicated region
    $region42: #{sr_model_forward.1} parent=1 // pred_check
      _
    $region43: #{sr_model_forward.1} parent=1 // pred_check_branch
      %1191 = sbr.rel (0) target = $region45
    $region44: #{sr_model_forward.1} parent=1 // pred_region
      _
    $region45: #{sr_model_forward.1} parent=1 // pred_fallthru
      _
    %1192 = vsyncpa [#allocation3], 1
    %1193 = vsyncpa [#allocation5], 1

</llo_original>
